<compile_context>
chip_gen: v6e
topology: v6e:2x2x1
jax: 0.10.0
libtpu: 0.0.40
codegen_flags: <defaults>
</compile_context>

<pallas_src>
import functools

import jax
import jax.numpy as jnp
from jax import lax
from jax.experimental import pallas as pl
from jax.experimental.pallas import tpu as pltpu

LANE = 128                              # vreg lane width (last dim)
_VMEM_INPUT_BUDGET = 24 * 1024 * 1024   # target bytes for double-buffered inputs
_VMEM_LIMIT = 32 * 1024 * 1024          # scoped-VMEM default on v6e/v7x


def _round_down(a, b):
    return a // b * b


@functools.lru_cache(maxsize=1)
def _tensorcores_per_chip():
    """Best-effort TensorCores-per-chip (megacore: v4 / v5p / v7x -> 2)."""
    try:
        kind = jax.devices()[0].device_kind.lower()
    except Exception:
        return 1
    if any(tag in kind for tag in ("v4", "v5p", "v7", "7x")):
        return 2
    return 1


def _xla_bce_sum(inputs, target, weights):
    """Reference / fallback: fused XLA elementwise + reduce (traffic-optimal)."""
    x = inputs.astype(jnp.float32)
    y = target.astype(jnp.float32)
    loss = jnp.maximum(x, 0.0) - x * y + jnp.log1p(jnp.exp(-jnp.abs(x)))
    if weights is not None:
        loss = loss * weights.astype(jnp.float32)
    return jnp.sum(loss)


def _wbce_kernel(*refs, tm, steps_per_core, total_blocks, rows_valid,
                 weighted, needs_bounds, needs_row_mask):
    """Accumulate one (tm, LANE) block of weighted BCE-with-logits into out."""
    if weighted:
        x_ref, y_ref, w_ref, out_ref = refs
    else:
        x_ref, y_ref, out_ref = refs
        w_ref = None

    p = pl.program_id(0)              # per-core axis
    i = pl.program_id(1)              # sequential reduction axis
    blk = p * steps_per_core + i      # global block index

    @pl.when(i == 0)
    def _():
        out_ref[...] = jnp.zeros_like(out_ref)

    def fold(loss):
        # (tm, 128) -> (8, 128): sublane-aligned reshape + pure VPU adds into
        # the output block that stays resident across the reduction axis.
        out_ref[...] += jnp.sum(loss.reshape(tm // 8, 8, LANE), axis=0)

    def accumulate():
        x = x_ref[...].astype(jnp.float32)
        y = y_ref[...].astype(jnp.float32)
        # Numerically stable BCE-with-logits (PyTorch's formulation).
        loss = jnp.maximum(x, 0.0) - x * y + jnp.log1p(jnp.exp(-jnp.abs(x)))
        if weighted:
            loss = loss * w_ref[...].astype(jnp.float32)

        if needs_row_mask:
            # Only the final block is ragged in rows; every other block takes
            # the unmasked fast path (no iota / compare / select per step).
            @pl.when(blk != total_blocks - 1)
            def _():
                fold(loss)

            @pl.when(blk == total_blocks - 1)
            def _():
                row_ids = (lax.broadcasted_iota(jnp.int32, (tm, LANE), 0)
                           + blk * tm)
                fold(jnp.where(row_ids < rows_valid, loss, 0.0))
        else:
            fold(loss)

    if needs_bounds:
        # Uneven per-core split: overflow slots re-read a clamped block but
        # skip all compute.
        @pl.when(blk < total_blocks)
        def _():
            accumulate()
    else:
        accumulate()


@functools.partial(jax.jit, static_argnames=("block_rows",))
def _wbce_impl(inputs, target, weights, *, block_rows=None):
    n = inputs.size
    if weights is not None and weights.shape != inputs.shape:
        weights = jnp.broadcast_to(weights, inputs.shape)

    rows = n // LANE
    if n == 0 or n % LANE != 0 or rows < 8:
        # Ragged / tiny sizes: aligning them for the kernel would need a full
        # padded copy of every operand (~3x HBM traffic); XLA's fused reduce is
        # already at the HBM roofline for this elementwise reduction.
        return _xla_bce_sum(inputs, target, weights)

    operands = [inputs.reshape(rows, LANE), target.reshape(rows, LANE)]
    if weights is not None:
        operands.append(weights.reshape(rows, LANE))
    weighted = weights is not None

    # Largest block (multiple of 8 rows) keeping double-buffered inputs within
    # the VMEM budget; dtype-aware, so bf16 operands get proportionally more rows.
    bytes_per_row = LANE * sum(op.dtype.itemsize for op in operands)
    tm_cap = max(512, _round_down((_VMEM_INPUT_BUDGET // 2) // bytes_per_row, 512))
    if block_rows is not None:                     # test / tuning override
        tm_cap = max(8, _round_down(int(block_rows), 8))
    tm = min(tm_cap, _round_down(rows, 8))

    total_blocks = pl.cdiv(rows, tm)
    ncores = _tensorcores_per_chip() if total_blocks >= 2 else 1
    steps_per_core = pl.cdiv(total_blocks, ncores)
    needs_bounds = ncores * steps_per_core != total_blocks
    needs_row_mask = rows % tm != 0

    if needs_bounds:
        def in_map(p, i):
            # Clamp so overflow grid slots re-read a valid block; their compute
            # is skipped in-kernel and contributes zero.
            return (jnp.minimum(p * steps_per_core + i, total_blocks - 1), 0)
    else:
        def in_map(p, i):
            return (p * steps_per_core + i, 0)

    kernel = functools.partial(
        _wbce_kernel,
        tm=tm, steps_per_core=steps_per_core, total_blocks=total_blocks,
        rows_valid=rows, weighted=weighted,
        needs_bounds=needs_bounds, needs_row_mask=needs_row_mask)

    partials = pl.pallas_call(
        kernel,
        out_shape=jax.ShapeDtypeStruct((ncores * 8, LANE), jnp.float32),
        grid_spec=pltpu.PrefetchScalarGridSpec(
            num_scalar_prefetch=0,
            grid=(ncores, steps_per_core),
            in_specs=[pl.BlockSpec((tm, LANE), in_map)] * len(operands),
            out_specs=pl.BlockSpec((8, LANE), lambda p, i: (p, 0)),
        ),
        compiler_params=pltpu.CompilerParams(
            # TODO(synk): if an xprof trace on v7x shows the size-2 leading axis
            # serialized, switch it to pltpu.CORE_PARALLEL / pl.core_map.
            dimension_semantics=("parallel", "arbitrary"),
            vmem_limit_bytes=_VMEM_LIMIT,
        ),
    )(*operands)
    # Tiny final reduction of per-core (8, 128) partial sums.
    return jnp.sum(partials)


def weight_bce_with_logits_loss(inputs, target, weights=None, *, block_rows=None):
    """JAX/Pallas equivalent of WeightBCEWithLogitsLoss.forward (sum-reduced)."""
    return _wbce_impl(inputs, target, weights, block_rows=block_rows)


if __name__ == "__main__":
    key = jax.random.PRNGKey(0)
    k1, k2, k3 = jax.random.split(key, 3)

    def check(x, y, w, **kw):
        out = jax.block_until_ready(weight_bce_with_logits_loss(x, y, w, **kw))
        ref = _xla_bce_sum(x, y, w)
        assert jnp.allclose(out, ref, rtol=1e-5, atol=1e-4), (out, ref, x.shape)

    # NCHW logits / targets / weights; 2048 elements -> single-block kernel path.
    shape = (2, 4, 16, 16)
    x = jax.random.normal(k1, shape, dtype=jnp.float32)
    y = jax.random.bernoulli(k2, 0.5, shape).astype(jnp.float32)
    w = jax.random.uniform(k3, shape, dtype=jnp.float32)
    check(x, y, w)          # weighted
    check(x, y, None)       # unweighted

    # Multi-block path with a ragged final block (and, on megacore chips, an
    # uneven per-core split): 384 rows x 128 lanes, forced 80-row blocks.
    shape2 = (4, 4, 24, 128)
    x2 = jax.random.normal(k1, shape2, dtype=jnp.float32)
    y2 = jax.random.bernoulli(k2, 0.5, shape2).astype(jnp.float32)
    w2 = jax.random.uniform(k3, shape2, dtype=jnp.float32)
    check(x2, y2, w2, block_rows=80)
    check(x2, y2, None, block_rows=80)

    # bf16 inputs exercise dtype-aware block sizing + in-kernel upcast.
    check(x2.astype(jnp.bfloat16), y2, w2.astype(jnp.bfloat16), block_rows=160)

    # Size not a multiple of 128 -> traffic-optimal fused-XLA fallback path.
    shape3 = (3, 5, 7, 11)
    x3 = jax.random.normal(k1, shape3, dtype=jnp.float32)
    y3 = jax.random.bernoulli(k2, 0.5, shape3).astype(jnp.float32)
    w3 = jax.random.uniform(k3, shape3, dtype=jnp.float32)
    check(x3, y3, w3)

    print("KERNEL_OK")
</pallas_src>

<mosaic_0001>
module attributes {stable_mosaic.version = 11 : i64} {
  func.func @_wbce_kernel(%arg0: i32, %arg1: i32, %arg2: memref<16x128xf32, #tpu.memory_space<vmem>>, %arg3: memref<16x128xf32, #tpu.memory_space<vmem>>, %arg4: memref<16x128xf32, #tpu.memory_space<vmem>>, %arg5: memref<8x128xf32, #tpu.memory_space<vmem>>) attributes {dimension_semantics = [#tpu.dimension_semantics<parallel>, #tpu.dimension_semantics<arbitrary>], iteration_bounds = array<i64: 1, 1>, scalar_prefetch = 0 : i64, scratch_operands = 0 : i64, tpu.core_type = #tpu.core_type<tc>, window_params = [{transform_indices = @transform_0, window_bounds = array<i64: 16, 128>}, {transform_indices = @transform_1, window_bounds = array<i64: 16, 128>}, {transform_indices = @transform_2, window_bounds = array<i64: 16, 128>}, {transform_indices = @transform_3, window_bounds = array<i64: 8, 128>}]} {
    %c0_i32 = arith.constant 0 : i32
    %0 = arith.cmpi eq, %arg1, %c0_i32 : i32
    %1 = arith.extui %0 : i1 to i32
    %c0_i32_0 = arith.constant 0 : i32
    %2 = arith.cmpi ne, %1, %c0_i32_0 : i32
    scf.if %2 {
      %cst_12 = arith.constant 0.000000e+00 : f32
      %22 = vector.broadcast %cst_12 : f32 to vector<8x128xf32>
      %c0_13 = arith.constant 0 : index
      %c0_14 = arith.constant 0 : index
      %23 = vector.load %arg5[%c0_13, %c0_14] : memref<8x128xf32, #tpu.memory_space<vmem>>, vector<8x128xf32>
      tpu.vector_store %arg5[%c0_13, %c0_14], %22 {strides = array<i32>} : memref<8x128xf32, #tpu.memory_space<vmem>>, vector<8x128xf32>,
    } else {
    }
    %c0 = arith.constant 0 : index
    %c0_1 = arith.constant 0 : index
    %3 = vector.load %arg2[%c0, %c0_1] : memref<16x128xf32, #tpu.memory_space<vmem>>, vector<16x128xf32>
    %c0_2 = arith.constant 0 : index
    %c0_3 = arith.constant 0 : index
    %4 = vector.load %arg3[%c0_2, %c0_3] : memref<16x128xf32, #tpu.memory_space<vmem>>, vector<16x128xf32>
    %cst = arith.constant 0.000000e+00 : f32
    %5 = vector.broadcast %cst : f32 to vector<16x128xf32>
    %6 = arith.maximumf %3, %5 : vector<16x128xf32>
    %7 = arith.mulf %3, %4 : vector<16x128xf32>
    %8 = arith.subf %6, %7 : vector<16x128xf32>
    %9 = math.absf %3 : vector<16x128xf32>
    %cst_4 = arith.constant 0.000000e+00 : f32
    %10 = vector.broadcast %cst_4 : f32 to vector<16x128xf32>
    %11 = arith.subf %10, %9 : vector<16x128xf32>
    %12 = math.exp %11 : vector<16x128xf32>
    %13 = math.log1p %12 : vector<16x128xf32>
    %14 = arith.addf %8, %13 : vector<16x128xf32>
    %c0_5 = arith.constant 0 : index
    %c0_6 = arith.constant 0 : index
    %15 = vector.load %arg4[%c0_5, %c0_6] : memref<16x128xf32, #tpu.memory_space<vmem>>, vector<16x128xf32>
    %16 = arith.mulf %14, %15 : vector<16x128xf32>
    %c0_7 = arith.constant 0 : index
    %c0_8 = arith.constant 0 : index
    %17 = vector.load %arg5[%c0_7, %c0_8] : memref<8x128xf32, #tpu.memory_space<vmem>>, vector<8x128xf32>
    %18 = vector.shape_cast %16 : vector<16x128xf32> to vector<2x8x128xf32>
    %cst_9 = arith.constant dense<0.000000e+00> : vector<8x128xf32>
    %19 = vector.multi_reduction <add>, %18, %cst_9 [0] : vector<2x8x128xf32> to vector<8x128xf32>
    %20 = arith.addf %17, %19 : vector<8x128xf32>
    %c0_10 = arith.constant 0 : index
    %c0_11 = arith.constant 0 : index
    %21 = vector.load %arg5[%c0_10, %c0_11] : memref<8x128xf32, #tpu.memory_space<vmem>>, vector<8x128xf32>
    tpu.vector_store %arg5[%c0_10, %c0_11], %20 {strides = array<i32>} : memref<8x128xf32, #tpu.memory_space<vmem>>, vector<8x128xf32>,
    return
  }
  func.func @transform_0(%arg0: i32, %arg1: i32) -> (i32, i32) {
    %c1_i32 = arith.constant 1 : i32
    %0 = arith.muli %arg0, %c1_i32 : i32
    %1 = arith.addi %0, %arg1 : i32
    %c0_i32 = arith.constant 0 : i32
    %c0_i32_0 = arith.constant 0 : i32
    return %1, %c0_i32 : i32, i32
  }
  func.func @transform_1(%arg0: i32, %arg1: i32) -> (i32, i32) {
    %c1_i32 = arith.constant 1 : i32
    %0 = arith.muli %arg0, %c1_i32 : i32
    %1 = arith.addi %0, %arg1 : i32
    %c0_i32 = arith.constant 0 : i32
    %c0_i32_0 = arith.constant 0 : i32
    return %1, %c0_i32 : i32, i32
  }
  func.func @transform_2(%arg0: i32, %arg1: i32) -> (i32, i32) {
    %c1_i32 = arith.constant 1 : i32
    %0 = arith.muli %arg0, %c1_i32 : i32
    %1 = arith.addi %0, %arg1 : i32
    %c0_i32 = arith.constant 0 : i32
    %c0_i32_0 = arith.constant 0 : i32
    return %1, %c0_i32 : i32, i32
  }
  func.func @transform_3(%arg0: i32, %arg1: i32) -> (i32, i32) {
    %c0_i32 = arith.constant 0 : i32
    %c0_i32_0 = arith.constant 0 : i32
    return %arg0, %c0_i32 : i32, i32
  }
}

</mosaic_0001>

<llo_original>
// kernel: _wbce_impl.1
$region0: #{_wbce_impl.1}
  #allocation0 [shape = 'u32[]', space=smem, size = 0x4, offset = 0x4, fixed_abs, tag = 'smem constant byte address 0x4 - core index']
  #allocation1 [shape = 'u32[144,128]{1,0:T(1,128)}', space=vmem, size = 0x12000, scoped, tag = 'internal scratch']
  %s0 = inlined_call_operand.vmem [shape: f32[16,128], index: 0, kind: input, shape index: {}]
  %s1 = inlined_call_operand.vmem [shape: f32[16,128], index: 1, kind: input, shape index: {}]
  %s2 = inlined_call_operand.vmem [shape: f32[16,128], index: 2, kind: input, shape index: {}]
  %s3 = inlined_call_operand.vmem [shape: f32[8,128], index: 3, kind: output, shape index: {}]
  %s4 = sld [smem:[#allocation0]]
  $region26: #{_wbce_impl.1} parent=0
    _
  %s6 = ssub.s32 1, %s4
  %s7 = scalar_select 0, %s6, %s4
  // Predicated region
  $region2: #{_wbce_impl.1} parent=0 // pred_check
    _
  $region3: #{_wbce_impl.1} parent=0 // pred_check_branch
    %9 = sbr.rel (0) target = $region5
  $region4: #{_wbce_impl.1} parent=0 // pred_region
    %s10 = sadd.s32 0, 0
    %s11 = smul.u32 2, %s10
    %p12 = scmp.lt.s32.totalorder %s11, 1
    %s13 = scalar_select %p12, %s11, 1
    %s14 = smul.addr %s13, 8
    %s15 = scalar_lea.vmem %s0, %s14
    %s16 = sadd.s32 0, 0
    %s17 = smul.u32 2, %s16
  $region5: #{_wbce_impl.1} parent=0 // pred_fallthru
    _
  // Predicated region
  $region6: #{_wbce_impl.1} parent=0 // pred_check
    _
  $region7: #{_wbce_impl.1} parent=0 // pred_check_branch
    %19 = sbr.rel (0) target = $region9
  $region8: #{_wbce_impl.1} parent=0 // pred_region
    %s20 = sadd.s32 0, 0
    %s21 = smul.u32 2, %s20
    %p22 = scmp.lt.s32.totalorder %s21, 1
    %s23 = scalar_select %p22, %s21, 1
    %s24 = smul.addr %s23, 8
    %s25 = scalar_lea.vmem %s1, %s24
    %s26 = sadd.s32 0, 0
    %s27 = smul.u32 2, %s26
  $region9: #{_wbce_impl.1} parent=0 // pred_fallthru
    _
  // Predicated region
  $region10: #{_wbce_impl.1} parent=0 // pred_check
    _
  $region11: #{_wbce_impl.1} parent=0 // pred_check_branch
    %29 = sbr.rel (0) target = $region13
  $region12: #{_wbce_impl.1} parent=0 // pred_region
    %s30 = sadd.s32 0, 0
    %s31 = smul.u32 2, %s30
    %p32 = scmp.lt.s32.totalorder %s31, 1
    %s33 = scalar_select %p32, %s31, 1
    %s34 = smul.addr %s33, 8
    %s35 = scalar_lea.vmem %s2, %s34
    %s36 = sadd.s32 0, 0
    %s37 = smul.u32 2, %s36
  $region13: #{_wbce_impl.1} parent=0 // pred_fallthru
    _
  %s38 = sadd.s32 0, 0
  %s39 = smul.u32 2, %s38
  %p40 = scmp.lt.s32.totalorder %s39, 1
  %s41 = scalar_select %p40, %s39, 1
  %s42 = smul.addr %s41, 8
  %s43 = scalar_lea.vmem %s0, %s42
  %s44 = sadd.s32 0, 0
  %s45 = smul.u32 2, %s44
  %p46 = scmp.lt.s32.totalorder %s45, 1
  %s47 = scalar_select %p46, %s45, 1
  %s48 = smul.addr %s47, 8
  %s49 = scalar_lea.vmem %s1, %s48
  %s50 = sadd.s32 0, 0
  %s51 = smul.u32 2, %s50
  %p52 = scmp.lt.s32.totalorder %s51, 1
  %s53 = scalar_select %p52, %s51, 1
  %s54 = smul.addr %s53, 8
  %s55 = scalar_lea.vmem %s2, %s54
  %s56 = sadd.s32 0, 0
  %s57 = smul.u32 2, %s56
  %p58 = scmp.lt.s32.totalorder %s57, 1
  %s59 = scalar_select %p58, %s57, 1
  %s60 = smul.addr %s59, 8
  %s61 = scalar_lea.vmem %s0, %s60
  %s62 = sadd.s32 0, 0
  %s63 = smul.u32 2, %s62
  %s64 = sadd.s32 0, 0
  %s65 = smul.u32 2, %s64
  %p66 = scmp.lt.s32.totalorder %s65, 1
  %s67 = scalar_select %p66, %s65, 1
  %s68 = smul.addr %s67, 8
  %s69 = scalar_lea.vmem %s1, %s68
  %s70 = sadd.s32 0, 0
  %s71 = smul.u32 2, %s70
  %s72 = sadd.s32 0, 0
  %s73 = smul.u32 2, %s72
  %p74 = scmp.lt.s32.totalorder %s73, 1
  %s75 = scalar_select %p74, %s73, 1
  %s76 = smul.addr %s75, 8
  %s77 = scalar_lea.vmem %s2, %s76
  %s78 = sadd.s32 0, 0
  %s79 = smul.u32 2, %s78
  %p80 = scmp.eq.s32.totalorder 0, 0
  // Predicated region
  $region14: #{_wbce_impl.1} parent=0 // pred_check
    %p81 = pneg %p80
  $region15: #{_wbce_impl.1} parent=0 // pred_check_branch
    %83 = sbr.rel (%p81) target = $region17
  $region16: #{_wbce_impl.1} parent=0 // pred_region
    %84 = vst [vmem:[%s3] sm:$0xff] 0.0
  $region17: #{_wbce_impl.1} parent=0 // pred_fallthru
    _
  %v85 = vld [vmem:[%s61] sm:$0xff]
  %v86 = vld [vmem:[%s61 + $0x8] sm:$0xff]
  %v87 = vld [vmem:[%s69] sm:$0xff]
  %v88 = vld [vmem:[%s69 + $0x8] sm:$0xff]
  %v89 = vmax.f32 %v85, 0.0
  %v90 = vmax.f32 %v86, 0.0
  %v91 = vmul.f32 %v85, %v87
  %v92 = vmul.f32 %v86, %v88
  %v93 = vsub.f32 %v89, %v91
  %v94 = vsub.f32 %v90, %v92
  %v95 = vand.u32 2147483647, %v85
  %v96 = vand.u32 2147483647, %v86
  %v97 = vsub.f32 0.0, %v95
  %v98 = vsub.f32 0.0, %v96
  %v99 = vmul.f32 %v97, 1.442695
  %v100 = vpow.pop %v99
  %v101 = vmul.f32 %v98, 1.442695
  %v102 = vpow.pop %v101
  %v103 = vadd.f32 %v100, 1.0
  %v104 = vlog2.pop %v103
  %v105 = vmul.f32 %v104, 0.6931472
  %v106 = vmul.f32 -0.5, %v100
  %v107 = vadd.f32 %v106, 1.0
  %v108 = vmul.f32 %v107, %v100
  %v109 = vand.u32 2147483647, %v100
  %vm110 = vcmp.lt.f32.partialorder %v109, 0.0004427343
  %v111 = vsel %vm110, %v108, %v105
  %v112 = vadd.f32 %v102, 1.0
  %v113 = vlog2.pop %v112
  %v114 = vmul.f32 %v113, 0.6931472
  %v115 = vmul.f32 -0.5, %v102
  %v116 = vadd.f32 %v115, 1.0
  %v117 = vmul.f32 %v116, %v102
  %v118 = vand.u32 2147483647, %v102
  %vm119 = vcmp.lt.f32.partialorder %v118, 0.0004427343
  %v120 = vsel %vm119, %v117, %v114
  %v121 = vadd.f32 %v93, %v111
  %v122 = vadd.f32 %v94, %v120
  %v123 = vld [vmem:[%s77] sm:$0xff]
  %v124 = vld [vmem:[%s77 + $0x8] sm:$0xff]
  %v125 = vmul.f32 %v121, %v123
  %v126 = vmul.f32 %v122, %v124
  %v127 = vld [vmem:[%s3] sm:$0xff]
  %v128 = vadd.f32 %v125, %v126
  %v129 = vadd.f32 %v127, %v128
  %130 = vst [vmem:[%s3] sm:$0xff] %v129
  // Predicated region
  $region18: #{_wbce_impl.1} parent=0 // pred_check
    _
  $region19: #{_wbce_impl.1} parent=0 // pred_check_branch
    %132 = sbr.rel (0) target = $region21
  $region20: #{_wbce_impl.1} parent=0 // pred_region
    _
  $region21: #{_wbce_impl.1} parent=0 // pred_fallthru
    _
  // Predicated region
  $region22: #{_wbce_impl.1} parent=0 // pred_check
    _
  $region23: #{_wbce_impl.1} parent=0 // pred_check_branch
    %134 = sbr.rel (0) target = $region25
  $region24: #{_wbce_impl.1} parent=0 // pred_region
    _
  $region25: #{_wbce_impl.1} parent=0 // pred_fallthru
    _

</llo_original>
